<compile_context>
chip_gen: v5e
topology: v5e:2x2
jax: 0.10.0
libtpu: 0.0.40
codegen_flags: <defaults>
</compile_context>

<pallas_src>
import functools

import jax
import jax.numpy as jnp
from jax.experimental import pallas as pl
from jax.experimental.pallas import tpu as pltpu


def attn_pred_kernel(h_ref, w_ref, out_ref, *, num_fields):
    h = h_ref[...]                                               # (TB, F*D)
    w = w_ref[...]                                               # (F*D, 2F)
    # Single fused MXU pass: columns [:F] are the per-field scores (mlp1 as a
    # block-diagonal matrix), columns [F:] are the attention logits (mlp2).
    y = jnp.dot(h, w, preferred_element_type=jnp.float32)       # (TB, 2F)
    score = y[:, :num_fields]                                    # (TB, F)
    weight = jax.nn.sigmoid(y[:, num_fields:])                   # (TB, F)
    logit = jnp.sum(weight * score, axis=1, keepdims=True)       # (TB, 1)
    out_ref[...] = logit.astype(out_ref.dtype)


def attentional_prediction(h, w1_torch, w2_torch, *, block_b=None,
                           compute_dtype=None):
    """h: [B, F, D]; w1_torch: [1, D] (mlp1.weight); w2_torch: [F, F*D]."""
    B, F, D = h.shape
    FD = F * D
    if compute_dtype is None:
        compute_dtype = h.dtype  # keep f32 by default; bf16 is optional

    # --- one-time weight prep (tiny XLA ops outside the kernel) -------------
    # Block-diagonal fold of mlp1: w1_blk[f*D + d, f] = w1[d].
    w1 = w1_torch.reshape(D).astype(compute_dtype)                   # (D,)
    eye = jnp.eye(F, dtype=compute_dtype)                            # (F, F)
    w1_blk = (eye[:, None, :] * w1[None, :, None]).reshape(FD, F)    # (FD, F)
    w2t = jnp.transpose(w2_torch).astype(compute_dtype)              # (FD, F)
    w_cat = jnp.concatenate([w1_blk, w2t], axis=1)                   # (FD, 2F)

    # --- lane-dense input layout + batch tiling ------------------------------
    h_flat = h.reshape(B, FD).astype(compute_dtype)
    if block_b is None:
        # Large tiles for real batches (pipelining / grid overhead), minimal
        # sublane-aligned padding for tiny batches.
        block_b = min(2048, max(8, pl.cdiv(B, 8) * 8))
    num_tiles = pl.cdiv(B, block_b)
    B_pad = num_tiles * block_b
    if B_pad != B:
        h_flat = jnp.pad(h_flat, ((0, B_pad - B), (0, 0)))

    itemsize = jnp.dtype(compute_dtype).itemsize
    cost = pl.CostEstimate(
        flops=2 * B_pad * FD * (2 * F) + 3 * B_pad * F,
        transcendentals=B_pad * F,
        bytes_accessed=B_pad * FD * itemsize + FD * 2 * F * itemsize + B_pad * 4,
    )

    out = pl.pallas_call(
        functools.partial(attn_pred_kernel, num_fields=F),
        out_shape=jax.ShapeDtypeStruct((B_pad, 1), jnp.float32),
        grid=(num_tiles,),
        in_specs=[
            # Batch tile of the flattened embeddings (double-buffered).
            pl.BlockSpec((block_b, FD), lambda i: (i, 0)),
            # Fused weights: constant index_map -> stays resident in VMEM.
            pl.BlockSpec((FD, 2 * F), lambda i: (0, 0)),
        ],
        # TODO(synk): output last dim is 1 (masked stores); traffic is only
        # B*4 bytes so a lane-dense (1, TB) layout was not worth the in-kernel
        # relayout it requires.
        out_specs=pl.BlockSpec((block_b, 1), lambda i: (i, 0)),
        compiler_params=pltpu.CompilerParams(
            dimension_semantics=("parallel",),
        ),
        cost_estimate=cost,
    )(h_flat, w_cat)
    return out[:B]


def reference(h, w1_torch, w2_torch):
    B, F, D = h.shape
    score = jnp.einsum("bfd,od->bfo", h, w1_torch)[..., 0]        # (B, F)
    weight = jax.nn.sigmoid(h.reshape(B, F * D) @ w2_torch.T)     # (B, F)
    return jnp.sum(weight * score, axis=1, keepdims=True)         # (B, 1)


if __name__ == "__main__":
    key = jax.random.PRNGKey(0)
    k_h, k_w1, k_w2, k_h2 = jax.random.split(key, 4)

    # Small shapes consistent with the module: batch=4, num_fields=8, dim=32.
    B, F, D = 4, 8, 32
    h = jax.random.normal(k_h, (B, F, D), dtype=jnp.float32)
    w1_torch = jax.random.normal(k_w1, (1, D), dtype=jnp.float32) * 0.1       # mlp1.weight
    w2_torch = jax.random.normal(k_w2, (F, F * D), dtype=jnp.float32) * 0.05  # mlp2[0].weight

    out = jax.block_until_ready(attentional_prediction(h, w1_torch, w2_torch))
    ref = reference(h, w1_torch, w2_torch)
    assert out.shape == (B, 1)
    assert jnp.allclose(out, ref, atol=1e-4, rtol=1e-4), (out, ref)

    # Second check: non-multiple batch with an explicit small tile, so the
    # padded multi-tile grid path is exercised too.
    B2 = 300
    h2 = jax.random.normal(k_h2, (B2, F, D), dtype=jnp.float32)
    out2 = jax.block_until_ready(
        attentional_prediction(h2, w1_torch, w2_torch, block_b=128)
    )
    ref2 = reference(h2, w1_torch, w2_torch)
    assert out2.shape == (B2, 1)
    assert jnp.allclose(out2, ref2, atol=1e-4, rtol=1e-4)

    print("KERNEL_OK")
</pallas_src>

<mosaic_0001>
module attributes {stable_mosaic.version = 11 : i64} {
  func.func @attn_pred_kernel(%arg0: i32, %arg1: memref<8x256xf32, #tpu.memory_space<vmem>>, %arg2: memref<256x16xf32, #tpu.memory_space<vmem>>, %arg3: memref<8x1xf32, #tpu.memory_space<vmem>>) attributes {dimension_semantics = [#tpu.dimension_semantics<parallel>], iteration_bounds = array<i64: 1>, scalar_prefetch = 0 : i64, scratch_operands = 0 : i64, tpu.core_type = #tpu.core_type<tc>, window_params = [{transform_indices = @transform_0, window_bounds = array<i64: 8, 256>}, {pipeline_mode = #tpu.pipeline_mode<synchronous>, transform_indices = @transform_1, window_bounds = array<i64: 256, 16>}, {transform_indices = @transform_2, window_bounds = array<i64: 8, 1>}]} {
    %c0 = arith.constant 0 : index
    %c0_0 = arith.constant 0 : index
    %0 = vector.load %arg1[%c0, %c0_0] : memref<8x256xf32, #tpu.memory_space<vmem>>, vector<8x256xf32>
    %c0_1 = arith.constant 0 : index
    %c0_2 = arith.constant 0 : index
    %1 = vector.load %arg2[%c0_1, %c0_2] : memref<256x16xf32, #tpu.memory_space<vmem>>, vector<256x16xf32>
    %cst = arith.constant dense<0.000000e+00> : vector<8x16xf32>
    %2 = tpu.matmul %0, %1, %cst {dimension_numbers = #tpu.dot_dimension_numbers<[1], [0], [0], [1], [0, 0, 1, 1], [], []>} : vector<8x256xf32>, vector<256x16xf32>, vector<8x16xf32> -> vector<8x16xf32>
    %3 = vector.extract_strided_slice %2 {offsets = [0, 0], sizes = [8, 8], strides = [1, 1]} : vector<8x16xf32> to vector<8x8xf32>
    %4 = vector.extract_strided_slice %2 {offsets = [0, 8], sizes = [8, 8], strides = [1, 1]} : vector<8x16xf32> to vector<8x8xf32>
    %5 = arith.negf %4 : vector<8x8xf32>
    %6 = math.exp %5 : vector<8x8xf32>
    %cst_3 = arith.constant 1.000000e+00 : f32
    %7 = vector.broadcast %cst_3 : f32 to vector<8x8xf32>
    %8 = arith.addf %7, %6 : vector<8x8xf32>
    %9 = arith.divf %7, %8 : vector<8x8xf32>
    %10 = arith.mulf %9, %3 : vector<8x8xf32>
    %cst_4 = arith.constant dense<0.000000e+00> : vector<8xf32>
    %11 = vector.multi_reduction <add>, %10, %cst_4 [1] : vector<8x8xf32> to vector<8xf32>
    %12 = vector.shape_cast %11 : vector<8xf32> to vector<8x1xf32>
    %c0_5 = arith.constant 0 : index
    %c0_6 = arith.constant 0 : index
    %13 = vector.load %arg3[%c0_5, %c0_6] : memref<8x1xf32, #tpu.memory_space<vmem>>, vector<8x1xf32>
    tpu.vector_store %arg3[%c0_5, %c0_6], %12 {strides = array<i32>} : memref<8x1xf32, #tpu.memory_space<vmem>>, vector<8x1xf32>,
    return
  }
  func.func @transform_0(%arg0: i32) -> (i32, i32) {
    %c0_i32 = arith.constant 0 : i32
    %c0_i32_0 = arith.constant 0 : i32
    return %arg0, %c0_i32 : i32, i32
  }
  func.func @transform_1(%arg0: i32) -> (i32, i32) {
    %c0_i32 = arith.constant 0 : i32
    %c0_i32_0 = arith.constant 0 : i32
    %c0_i32_1 = arith.constant 0 : i32
    return %c0_i32, %c0_i32_0 : i32, i32
  }
  func.func @transform_2(%arg0: i32) -> (i32, i32) {
    %c0_i32 = arith.constant 0 : i32
    %c0_i32_0 = arith.constant 0 : i32
    return %arg0, %c0_i32 : i32, i32
  }
}

</mosaic_0001>

<llo_original>
// kernel: tpu_custom_call.1
$region0: #{tpu_custom_call.1}
  #allocation0 [shape = 'u32[]', space=smem, size = 0x4, offset = 0x4, fixed_abs, tag = 'smem constant byte address 0x4 - core index']
  #allocation1 [shape = 'u32[72,128]{1,0:T(1,128)}', space=vmem, size = 0x9000, scoped, tag = 'internal scratch']
  %s0 = inlined_call_operand.vmem [shape: f32[8,256], index: 0, kind: input, shape index: {}]
  %s1 = inlined_call_operand.vmem [shape: f32[256,16], index: 1, kind: input, shape index: {}]
  %s2 = inlined_call_operand.vmem [shape: f32[8,1], index: 2, kind: output, shape index: {}]
  %s3 = sld [smem:[#allocation0]]
  $region18: #{tpu_custom_call.1} parent=0
    _
  %s5 = ssub.s32 1, %s3
  %s6 = scalar_select 0, %s5, %s3
  // Predicated region
  $region2: #{tpu_custom_call.1} parent=0 // pred_check
    _
  $region3: #{tpu_custom_call.1} parent=0 // pred_check_branch
    %8 = sbr.rel (0) target = $region5
  $region4: #{tpu_custom_call.1} parent=0 // pred_region
    _
  $region5: #{tpu_custom_call.1} parent=0 // pred_fallthru
    _
  // Predicated region
  $region6: #{tpu_custom_call.1} parent=0 // pred_check
    _
  $region7: #{tpu_custom_call.1} parent=0 // pred_check_branch
    %10 = sbr.rel (0) target = $region9
  $region8: #{tpu_custom_call.1} parent=0 // pred_region
    _
  $region9: #{tpu_custom_call.1} parent=0 // pred_fallthru
    _
  %v11 = vld [vmem:[%s0] sm:$0xff]
  %v12 = vld [vmem:[%s0 + $0x8] sm:$0xff]
  %v13 = vld [vmem:[%s1] sm:$0xff]
  %v14 = vld [vmem:[%s1 + $0x8] sm:$0xff]
  %v15 = vld [vmem:[%s1 + $0x10] sm:$0xff]
  %v16 = vld [vmem:[%s1 + $0x18] sm:$0xff]
  %v17 = vld [vmem:[%s1 + $0x20] sm:$0xff]
  %v18 = vld [vmem:[%s1 + $0x28] sm:$0xff]
  %v19 = vld [vmem:[%s1 + $0x30] sm:$0xff]
  %v20 = vld [vmem:[%s1 + $0x38] sm:$0xff]
  %v21 = vld [vmem:[%s1 + $0x40] sm:$0xff]
  %v22 = vld [vmem:[%s1 + $0x48] sm:$0xff]
  %v23 = vld [vmem:[%s1 + $0x50] sm:$0xff]
  %v24 = vld [vmem:[%s1 + $0x58] sm:$0xff]
  %v25 = vld [vmem:[%s1 + $0x60] sm:$0xff]
  %v26 = vld [vmem:[%s1 + $0x68] sm:$0xff]
  %v27 = vld [vmem:[%s1 + $0x70] sm:$0xff]
  %v28 = vld [vmem:[%s1 + $0x78] sm:$0xff]
  %v29 = vld [vmem:[%s1 + $0x80] sm:$0xff]
  %v30 = vld [vmem:[%s1 + $0x88] sm:$0xff]
  %v31 = vld [vmem:[%s1 + $0x90] sm:$0xff]
  %v32 = vld [vmem:[%s1 + $0x98] sm:$0xff]
  %v33 = vld [vmem:[%s1 + $0xa0] sm:$0xff]
  %v34 = vld [vmem:[%s1 + $0xa8] sm:$0xff]
  %v35 = vld [vmem:[%s1 + $0xb0] sm:$0xff]
  %v36 = vld [vmem:[%s1 + $0xb8] sm:$0xff]
  %v37 = vld [vmem:[%s1 + $0xc0] sm:$0xff]
  %v38 = vld [vmem:[%s1 + $0xc8] sm:$0xff]
  %v39 = vld [vmem:[%s1 + $0xd0] sm:$0xff]
  %v40 = vld [vmem:[%s1 + $0xd8] sm:$0xff]
  %v41 = vld [vmem:[%s1 + $0xe0] sm:$0xff]
  %v42 = vld [vmem:[%s1 + $0xe8] sm:$0xff]
  %v43 = vld [vmem:[%s1 + $0xf0] sm:$0xff]
  %v44 = vld [vmem:[%s1 + $0xf8] sm:$0xff]
  %45 = vmatpush.msra.mxu0 %v28
  %46 = vmatpush.msra.mxu0 %v27
  %47 = vmatpush.msra.mxu0 %v26
  %48 = vmatpush.msra.mxu0 %v25
  %49 = vmatpush.msra.mxu0 %v24
  %50 = vmatpush.msra.mxu0 %v23
  %51 = vmatpush.msra.mxu0 %v22
  %52 = vmatpush.msra.mxu0 %v21
  %53 = vmatpush.msra.mxu0 %v20
  %54 = vmatpush.msra.mxu0 %v19
  %55 = vmatpush.msra.mxu0 %v18
  %56 = vmatpush.msra.mxu0 %v17
  %57 = vmatpush.msra.mxu0 %v16
  %58 = vmatpush.msra.mxu0 %v15
  %59 = vmatpush.msra.mxu0 %v14
  %60 = vmatpush.msra.mxu0 %v13
  %61 = vmatmul.f32.gmra.mxu0 %v11
  %v62 = vpop.f32.mrf.mxu0
  %v63 = vadd.f32 0.0, %v62
  %64 = vdwg.mxu0
  %65 = vmatpush.msra.mxu0 %v44
  %66 = vmatpush.msra.mxu0 %v43
  %67 = vmatpush.msra.mxu0 %v42
  %68 = vmatpush.msra.mxu0 %v41
  %69 = vmatpush.msra.mxu0 %v40
  %70 = vmatpush.msra.mxu0 %v39
  %71 = vmatpush.msra.mxu0 %v38
  %72 = vmatpush.msra.mxu0 %v37
  %73 = vmatpush.msra.mxu0 %v36
  %74 = vmatpush.msra.mxu0 %v35
  %75 = vmatpush.msra.mxu0 %v34
  %76 = vmatpush.msra.mxu0 %v33
  %77 = vmatpush.msra.mxu0 %v32
  %78 = vmatpush.msra.mxu0 %v31
  %79 = vmatpush.msra.mxu0 %v30
  %80 = vmatpush.msra.mxu0 %v29
  %81 = vmatmul.f32.gmra.mxu0 %v12
  %v82 = vpop.f32.mrf.mxu0
  %v83 = vadd.f32 %v63, %v82
  %84 = vdwg.mxu0
  %v85 = vxor.u32 %v83, 2147483648
  %v86 = vmul.f32 %v85, 1.442695
  %v87 = vpow.pop %v86
  %v88 = vadd.f32 %v87, 1.0
  %v89 = vrcp.pop %v88
  %v90 = vmul.f32 %v88, %v89
  %v91 = vsub.f32 1.0, %v90
  %v92 = vmul.f32 %v89, %v91
  %v93 = vadd.f32 %v89, %v92
  %vm94 = vweird.f32 %v88
  %vm95 = vweird.f32 %v89
  %vm96 = vmor %vm94, %vm95
  %v97 = vsel %vm96, %v89, %v93
  %v98 = vand.u32 2147483647, %v88
  %vm99 = vcmp.eq.f32.partialorder %v98, 8.507059e+37
  %v100 = vand.u32 %v88, 2147483648
  %v101 = vor.u32 1.1754944e-38, %v100
  %v102 = vsel %vm99, %v101, %v97
  %v103 = vmul.f32 1.0, %v102
  %105 = vrot.lane.b32.xlu0 %v83, 8
  %v106 = vpop.permute.xlu0 %105
  %v108 = vmul.f32 %v103, %v106
  %110 = vrot.lane.b32.xlu0 %v108, 120
  %v111 = vpop.permute.xlu0 %110
  %vm113 = vcmask 64512
  %v114 = vsel %vm113, %v111, 0.0
  %115 = vadd.xlane.f32.xlu0 %v114
  %v116 = vpop.xlane.xlu0 %115
  %vm117 = vcmask 7168
  %118 = vst.msk [vmem:[%s2] sm:$0xff] %vm117, %v116
  // Predicated region
  $region10: #{tpu_custom_call.1} parent=0 // pred_check
    _
  $region11: #{tpu_custom_call.1} parent=0 // pred_check_branch
    %120 = sbr.rel (0) target = $region13
  $region12: #{tpu_custom_call.1} parent=0 // pred_region
    _
  $region13: #{tpu_custom_call.1} parent=0 // pred_fallthru
    _
  // Predicated region
  $region14: #{tpu_custom_call.1} parent=0 // pred_check
    _
  $region15: #{tpu_custom_call.1} parent=0 // pred_check_branch
    %122 = sbr.rel (0) target = $region17
  $region16: #{tpu_custom_call.1} parent=0 // pred_region
    _
  $region17: #{tpu_custom_call.1} parent=0 // pred_fallthru
    _

</llo_original>
